<compile_context>
chip_gen: v7x
topology: tpu7x:2x2x1
jax: 0.10.0
libtpu: 0.0.40
codegen_flags: <defaults>
</compile_context>

<pallas_src>
import functools

import jax
import jax.numpy as jnp
from jax.experimental import pallas as pl
from jax.experimental.pallas import tpu as pltpu

_LANES = 128
_SUBLANES = 8


def _cdiv(a, b):
    return -(-a // b)


def _round_up(a, b):
    return _cdiv(a, b) * b


def _native_sublane_tile(dtype):
    """Native sublane tile: 8 for 32-bit, 16 for 16-bit, 32 for 8-bit dtypes."""
    itemsize = jnp.dtype(dtype).itemsize
    return _SUBLANES * max(1, 4 // itemsize)


def _num_core_splits():
    """2-way split only on multi-TensorCore chips (v7x); 1 on v5e/v6e."""
    try:
        kind = jax.devices()[0].device_kind.lower()
    except Exception:
        return 1
    return 2 if "v7" in kind else 1


def _thresh_loss_kernel(pred_ref, thr_ref, cnt_ref, out_ref, *,
                        rows_main, row_tile, blocks_per_split, needs_mask):
    """Accumulate sum(|pred - thr| * sqrt(cnt)) into a per-split (8,128) block."""
    j = pl.program_id(1)

    @pl.when(j == 0)
    def _init():
        out_ref[...] = jnp.zeros_like(out_ref)

    p = pred_ref[...].astype(jnp.float32)
    t = thr_ref[...].astype(jnp.float32)
    c = cnt_ref[...].astype(jnp.float32)
    val = jnp.abs(p - t) * jnp.sqrt(c)

    if needs_mask:
        # Row-level mask only: the wrapper already handles the <128-element
        # tail in XLA, so only whole out-of-slab rows need zeroing.  A select
        # AFTER the sqrt still kills any NaN from garbage (ragged / clamped
        # block) rows, and row indices keep int32 safe up to 2^31 rows.
        blk = pl.program_id(0) * blocks_per_split + j
        row_ids = jax.lax.broadcasted_iota(jnp.int32, (row_tile, _LANES), 0)
        val = jnp.where(blk * row_tile + row_ids < rows_main, val, 0.0)

    # (rt,128) -> (rt//8, 8, 128) preserves (sublane, lane) tiling; the
    # leading-axis sum is pure VPU work (no cross-lane reduce here).
    partial = jnp.sum(val.reshape(row_tile // _SUBLANES, _SUBLANES, _LANES), axis=0)
    out_ref[...] += partial[None, :, :]


@functools.partial(jax.jit, static_argnames=("row_tile",))
def thresh_loss(prediction, gt_thresh, gt_count, row_tile=4096):
    """Pallas implementation of ThreshLoss.forward. Returns a float32 scalar."""
    assert prediction.shape == gt_thresh.shape == gt_count.shape, (
        "ThreshLoss is used elementwise; inputs must share a shape.")
    n_elems = int(prediction.size)

    p_flat = jnp.reshape(prediction, (-1,))
    t_flat = jnp.reshape(gt_thresh, (-1,))
    c_flat = jnp.reshape(gt_count, (-1,))

    # Sub-row (<128 elem) tail: tiny XLA reduce instead of padding copies of
    # all three inputs.  Padded/OOB data never reaches the loss.
    rem = n_elems % _LANES
    main = n_elems - rem
    if rem:
        tail_sum = jnp.sum(
            jnp.abs(p_flat[main:].astype(jnp.float32)
                    - t_flat[main:].astype(jnp.float32))
            * jnp.sqrt(c_flat[main:].astype(jnp.float32)))
    else:
        tail_sum = jnp.float32(0.0)

    if main == 0:   # fewer than 128 elements: nothing for the kernel to do
        return (tail_sum / jnp.float32(n_elems)).astype(jnp.float32)

    rows = main // _LANES

    # Row tile: multiple of the coarsest native sublane tile among the inputs
    # (8 f32 / 16 bf16 / 32 int8), clamped to what the slab actually needs.
    sub = max(_native_sublane_tile(x.dtype)
              for x in (prediction, gt_thresh, gt_count))
    rt = max(sub, min(_round_up(row_tile, sub), _round_up(rows, sub)))
    nblocks = _cdiv(rows, rt)

    num_splits = _num_core_splits()
    if nblocks < 4:
        num_splits = 1      # too few blocks: a split would just re-read data
    blocks_per_split = _cdiv(nblocks, num_splits)
    # Mask only when the grid logically covers rows beyond the slab (ragged
    # last block and/or clamped blocks created by the split).
    needs_mask = (num_splits * blocks_per_split * rt != rows)

    # Lane-dense 128-aligned prefix in native dtype (ideally aliases in HLO).
    pred2d = p_flat[:main].reshape(rows, _LANES)
    thr2d = t_flat[:main].reshape(rows, _LANES)
    cnt2d = c_flat[:main].reshape(rows, _LANES)

    last_block = nblocks - 1
    if num_splits * blocks_per_split > nblocks:
        def in_map(s, j):
            # Clamp so no DMA ever starts past the slab; the kernel masks the
            # clamped block's contribution to zero.
            return (jnp.minimum(s * blocks_per_split + j, last_block), 0)
    else:
        def in_map(s, j):
            return (s * blocks_per_split + j, 0)

    in_spec = pl.BlockSpec((rt, _LANES), in_map)

    kernel = functools.partial(
        _thresh_loss_kernel, rows_main=rows, row_tile=rt,
        blocks_per_split=blocks_per_split, needs_mask=needs_mask)

    # VMEM budget: 2 pipeline buffers x 3 input blocks + resident output.
    in_block_bytes = sum(rt * _LANES * jnp.dtype(x.dtype).itemsize
                         for x in (prediction, gt_thresh, gt_count))
    vmem_need = 2 * in_block_bytes + 2 * num_splits * _SUBLANES * _LANES * 4 + (2 << 20)
    cp_kwargs = dict(dimension_semantics=("parallel", "arbitrary"))
    if vmem_need > (16 << 20):   # above v5e's default scoped-VMEM limit
        cp_kwargs["vmem_limit_bytes"] = int(vmem_need)
    # TODO(synk): on v7x, verify in the trace that the leading "parallel" axis
    # really shards across both TensorCores; if not, switch that axis to
    # pltpu.CORE_PARALLEL (split is only enabled on v7x-class devices anyway).
    compiler_params = pltpu.CompilerParams(**cp_kwargs)

    partials = pl.pallas_call(
        kernel,
        out_shape=jax.ShapeDtypeStruct(
            (num_splits, _SUBLANES, _LANES), jnp.float32),
        grid_spec=pltpu.PrefetchScalarGridSpec(
            num_scalar_prefetch=0,
            grid=(num_splits, blocks_per_split),
            in_specs=[in_spec, in_spec, in_spec],
            out_specs=pl.BlockSpec((1, _SUBLANES, _LANES),
                                   lambda s, j: (s, 0, 0)),
        ),
        compiler_params=compiler_params,
    )(pred2d, thr2d, cnt2d)

    # Final tiny reduce (num_splits*8*128 partial sums) + mean over the
    # ORIGINAL element count.
    return ((jnp.sum(partials) + tail_sum)
            / jnp.float32(n_elems)).astype(jnp.float32)


def thresh_loss_ref(prediction, gt_thresh, gt_count):
    """Pure-JAX reference mirroring the PyTorch module (f32 math)."""
    p = prediction.astype(jnp.float32)
    t = gt_thresh.astype(jnp.float32)
    c = gt_count.astype(jnp.float32)
    return jnp.mean(jnp.abs(p - t) * jnp.sqrt(c)).astype(jnp.float32)


if __name__ == "__main__":
    key = jax.random.PRNGKey(0)

    cases = [
        # (shape, dtype, row_tile)
        ((2, 4, 16, 16), jnp.float32, 4096),    # divisible by 128, single block
        ((2, 4, 16, 16), jnp.float32, 8),       # multi-block streaming path
        ((3, 5, 37), jnp.float32, 4096),        # 555 elems: XLA tail + row mask
        ((2, 4, 16, 16), jnp.bfloat16, 4096),   # native bf16 (16,128) tiling
        ((2, 90), jnp.float32, 4096),           # < 128 elems: tail-only path
    ]

    for shape, dtype, rt in cases:
        key, k1, k2, k3 = jax.random.split(key, 4)
        prediction = jax.random.uniform(k1, shape, dtype=jnp.float32).astype(dtype)
        gt_thresh = jax.random.uniform(k2, shape, dtype=jnp.float32).astype(dtype)
        gt_count = (jax.random.uniform(k3, shape, dtype=jnp.float32)
                    * 100.0).astype(dtype)   # non-negative counts

        out = jax.block_until_ready(
            thresh_loss(prediction, gt_thresh, gt_count, row_tile=rt))
        ref = thresh_loss_ref(prediction, gt_thresh, gt_count)
        assert jnp.allclose(out, ref, rtol=1e-5, atol=1e-4), (shape, dtype, out, ref)

    print("KERNEL_OK")
</pallas_src>

<mosaic_0001>
module attributes {stable_mosaic.version = 11 : i64} {
  func.func @_thresh_loss_kernel(%arg0: i32, %arg1: i32, %arg2: memref<16x128xf32, #tpu.memory_space<vmem>>, %arg3: memref<16x128xf32, #tpu.memory_space<vmem>>, %arg4: memref<16x128xf32, #tpu.memory_space<vmem>>, %arg5: memref<1x8x128xf32, #tpu.memory_space<vmem>>) attributes {dimension_semantics = [#tpu.dimension_semantics<parallel>, #tpu.dimension_semantics<arbitrary>], iteration_bounds = array<i64: 1, 1>, scalar_prefetch = 0 : i64, scratch_operands = 0 : i64, tpu.core_type = #tpu.core_type<tc>, window_params = [{transform_indices = @transform_0, window_bounds = array<i64: 16, 128>}, {transform_indices = @transform_1, window_bounds = array<i64: 16, 128>}, {transform_indices = @transform_2, window_bounds = array<i64: 16, 128>}, {transform_indices = @transform_3, window_bounds = array<i64: 1, 8, 128>}]} {
    %c0_i32 = arith.constant 0 : i32
    %0 = arith.cmpi eq, %arg1, %c0_i32 : i32
    %1 = arith.extui %0 : i1 to i32
    %c0_i32_0 = arith.constant 0 : i32
    %2 = arith.cmpi ne, %1, %c0_i32_0 : i32
    scf.if %2 {
      %cst_12 = arith.constant 0.000000e+00 : f32
      %16 = vector.broadcast %cst_12 : f32 to vector<1x8x128xf32>
      %c0_13 = arith.constant 0 : index
      %c0_14 = arith.constant 0 : index
      %c0_15 = arith.constant 0 : index
      %17 = vector.load %arg5[%c0_13, %c0_14, %c0_15] : memref<1x8x128xf32, #tpu.memory_space<vmem>>, vector<1x8x128xf32>
      tpu.vector_store %arg5[%c0_13, %c0_14, %c0_15], %16 {strides = array<i32>} : memref<1x8x128xf32, #tpu.memory_space<vmem>>, vector<1x8x128xf32>,
    } else {
    }
    %c0 = arith.constant 0 : index
    %c0_1 = arith.constant 0 : index
    %3 = vector.load %arg2[%c0, %c0_1] : memref<16x128xf32, #tpu.memory_space<vmem>>, vector<16x128xf32>
    %c0_2 = arith.constant 0 : index
    %c0_3 = arith.constant 0 : index
    %4 = vector.load %arg3[%c0_2, %c0_3] : memref<16x128xf32, #tpu.memory_space<vmem>>, vector<16x128xf32>
    %c0_4 = arith.constant 0 : index
    %c0_5 = arith.constant 0 : index
    %5 = vector.load %arg4[%c0_4, %c0_5] : memref<16x128xf32, #tpu.memory_space<vmem>>, vector<16x128xf32>
    %6 = arith.subf %3, %4 : vector<16x128xf32>
    %7 = math.absf %6 : vector<16x128xf32>
    %8 = math.sqrt %5 : vector<16x128xf32>
    %9 = arith.mulf %7, %8 : vector<16x128xf32>
    %10 = vector.shape_cast %9 : vector<16x128xf32> to vector<2x8x128xf32>
    %cst = arith.constant dense<0.000000e+00> : vector<8x128xf32>
    %11 = vector.multi_reduction <add>, %10, %cst [0] : vector<2x8x128xf32> to vector<8x128xf32>
    %c0_6 = arith.constant 0 : index
    %c0_7 = arith.constant 0 : index
    %c0_8 = arith.constant 0 : index
    %12 = vector.load %arg5[%c0_6, %c0_7, %c0_8] : memref<1x8x128xf32, #tpu.memory_space<vmem>>, vector<1x8x128xf32>
    %13 = vector.shape_cast %11 : vector<8x128xf32> to vector<1x8x128xf32>
    %14 = arith.addf %12, %13 : vector<1x8x128xf32>
    %c0_9 = arith.constant 0 : index
    %c0_10 = arith.constant 0 : index
    %c0_11 = arith.constant 0 : index
    %15 = vector.load %arg5[%c0_9, %c0_10, %c0_11] : memref<1x8x128xf32, #tpu.memory_space<vmem>>, vector<1x8x128xf32>
    tpu.vector_store %arg5[%c0_9, %c0_10, %c0_11], %14 {strides = array<i32>} : memref<1x8x128xf32, #tpu.memory_space<vmem>>, vector<1x8x128xf32>,
    return
  }
  func.func @transform_0(%arg0: i32, %arg1: i32) -> (i32, i32) {
    %c1_i32 = arith.constant 1 : i32
    %0 = arith.muli %arg0, %c1_i32 : i32
    %1 = arith.addi %0, %arg1 : i32
    %c0_i32 = arith.constant 0 : i32
    %c0_i32_0 = arith.constant 0 : i32
    return %1, %c0_i32 : i32, i32
  }
  func.func @transform_1(%arg0: i32, %arg1: i32) -> (i32, i32) {
    %c1_i32 = arith.constant 1 : i32
    %0 = arith.muli %arg0, %c1_i32 : i32
    %1 = arith.addi %0, %arg1 : i32
    %c0_i32 = arith.constant 0 : i32
    %c0_i32_0 = arith.constant 0 : i32
    return %1, %c0_i32 : i32, i32
  }
  func.func @transform_2(%arg0: i32, %arg1: i32) -> (i32, i32) {
    %c1_i32 = arith.constant 1 : i32
    %0 = arith.muli %arg0, %c1_i32 : i32
    %1 = arith.addi %0, %arg1 : i32
    %c0_i32 = arith.constant 0 : i32
    %c0_i32_0 = arith.constant 0 : i32
    return %1, %c0_i32 : i32, i32
  }
  func.func @transform_3(%arg0: i32, %arg1: i32) -> (i32, i32, i32) {
    %c0_i32 = arith.constant 0 : i32
    %c0_i32_0 = arith.constant 0 : i32
    %c0_i32_1 = arith.constant 0 : i32
    return %arg0, %c0_i32, %c0_i32_0 : i32, i32, i32
  }
}

</mosaic_0001>

<llo_original>
// kernel: thresh_loss.1
$region0: #{thresh_loss.1}
  #allocation0 [shape = 'u32[]', space=smem, size = 0x4, offset = 0x4, fixed_abs, tag = 'smem constant byte address 0x4 - core index']
  #allocation1 [shape = 'u32[144,128]{1,0:T(1,128)}', space=vmem, size = 0x12000, scoped, tag = 'internal scratch']
  %s0 = inlined_call_operand.vmem [shape: f32[16,128], index: 0, kind: input, shape index: {}]
  %s1 = inlined_call_operand.vmem [shape: f32[16,128], index: 1, kind: input, shape index: {}]
  %s2 = inlined_call_operand.vmem [shape: f32[16,128], index: 2, kind: input, shape index: {}]
  %s3 = inlined_call_operand.vmem [shape: f32[1,8,128], index: 3, kind: output, shape index: {}]
  %s4 = sld [smem:[#allocation0]]
  $region26: #{thresh_loss.1} parent=0
    _
  %s6 = ssub.s32 1, %s4
  %s7 = scalar_select 0, %s6, %s4
  // Predicated region
  $region2: #{thresh_loss.1} parent=0 // pred_check
    _
  $region3: #{thresh_loss.1} parent=0 // pred_check_branch
    %9 = sbr.rel (0) target = $region5
  $region4: #{thresh_loss.1} parent=0 // pred_region
    %s10 = sadd.s32 0, 0
    %s11 = smul.u32 2, %s10
    %p12 = scmp.lt.s32.totalorder %s11, 1
    %s13 = scalar_select %p12, %s11, 1
    %s14 = smul.addr %s13, 8
    %s15 = scalar_lea.vmem %s0, %s14
    %s16 = sadd.s32 0, 0
    %s17 = smul.u32 2, %s16
  $region5: #{thresh_loss.1} parent=0 // pred_fallthru
    _
  // Predicated region
  $region6: #{thresh_loss.1} parent=0 // pred_check
    _
  $region7: #{thresh_loss.1} parent=0 // pred_check_branch
    %19 = sbr.rel (0) target = $region9
  $region8: #{thresh_loss.1} parent=0 // pred_region
    %s20 = sadd.s32 0, 0
    %s21 = smul.u32 2, %s20
    %p22 = scmp.lt.s32.totalorder %s21, 1
    %s23 = scalar_select %p22, %s21, 1
    %s24 = smul.addr %s23, 8
    %s25 = scalar_lea.vmem %s1, %s24
    %s26 = sadd.s32 0, 0
    %s27 = smul.u32 2, %s26
  $region9: #{thresh_loss.1} parent=0 // pred_fallthru
    _
  // Predicated region
  $region10: #{thresh_loss.1} parent=0 // pred_check
    _
  $region11: #{thresh_loss.1} parent=0 // pred_check_branch
    %29 = sbr.rel (0) target = $region13
  $region12: #{thresh_loss.1} parent=0 // pred_region
    %s30 = sadd.s32 0, 0
    %s31 = smul.u32 2, %s30
    %p32 = scmp.lt.s32.totalorder %s31, 1
    %s33 = scalar_select %p32, %s31, 1
    %s34 = smul.addr %s33, 8
    %s35 = scalar_lea.vmem %s2, %s34
    %s36 = sadd.s32 0, 0
    %s37 = smul.u32 2, %s36
  $region13: #{thresh_loss.1} parent=0 // pred_fallthru
    _
  %s38 = sadd.s32 0, 0
  %s39 = smul.u32 2, %s38
  %p40 = scmp.lt.s32.totalorder %s39, 1
  %s41 = scalar_select %p40, %s39, 1
  %s42 = smul.addr %s41, 8
  %s43 = scalar_lea.vmem %s0, %s42
  %s44 = sadd.s32 0, 0
  %s45 = smul.u32 2, %s44
  %p46 = scmp.lt.s32.totalorder %s45, 1
  %s47 = scalar_select %p46, %s45, 1
  %s48 = smul.addr %s47, 8
  %s49 = scalar_lea.vmem %s1, %s48
  %s50 = sadd.s32 0, 0
  %s51 = smul.u32 2, %s50
  %p52 = scmp.lt.s32.totalorder %s51, 1
  %s53 = scalar_select %p52, %s51, 1
  %s54 = smul.addr %s53, 8
  %s55 = scalar_lea.vmem %s2, %s54
  %s56 = sadd.s32 0, 0
  %s57 = smul.u32 2, %s56
  %p58 = scmp.lt.s32.totalorder %s57, 1
  %s59 = scalar_select %p58, %s57, 1
  %s60 = smul.addr %s59, 8
  %s61 = scalar_lea.vmem %s0, %s60
  %s62 = sadd.s32 0, 0
  %s63 = smul.u32 2, %s62
  %s64 = sadd.s32 0, 0
  %s65 = smul.u32 2, %s64
  %p66 = scmp.lt.s32.totalorder %s65, 1
  %s67 = scalar_select %p66, %s65, 1
  %s68 = smul.addr %s67, 8
  %s69 = scalar_lea.vmem %s1, %s68
  %s70 = sadd.s32 0, 0
  %s71 = smul.u32 2, %s70
  %s72 = sadd.s32 0, 0
  %s73 = smul.u32 2, %s72
  %p74 = scmp.lt.s32.totalorder %s73, 1
  %s75 = scalar_select %p74, %s73, 1
  %s76 = smul.addr %s75, 8
  %s77 = scalar_lea.vmem %s2, %s76
  %s78 = sadd.s32 0, 0
  %s79 = smul.u32 2, %s78
  %p80 = scmp.eq.s32.totalorder 0, 0
  // Predicated region
  $region14: #{thresh_loss.1} parent=0 // pred_check
    %p81 = pneg %p80
  $region15: #{thresh_loss.1} parent=0 // pred_check_branch
    %83 = sbr.rel (%p81) target = $region17
  $region16: #{thresh_loss.1} parent=0 // pred_region
    %84 = vst [vmem:[%s3] sm:$0xff] 0.0
  $region17: #{thresh_loss.1} parent=0 // pred_fallthru
    _
  %v85 = vld [vmem:[%s61] sm:$0xff]
  %v86 = vld [vmem:[%s61 + $0x8] sm:$0xff]
  %v87 = vld [vmem:[%s69] sm:$0xff]
  %v88 = vld [vmem:[%s69 + $0x8] sm:$0xff]
  %v89 = vld [vmem:[%s77] sm:$0xff]
  %v90 = vld [vmem:[%s77 + $0x8] sm:$0xff]
  %v91 = vsub.f32 %v85, %v87
  %v92 = vsub.f32 %v86, %v88
  %v93 = vand.u32 2147483647, %v91
  %v94 = vand.u32 2147483647, %v92
  %v95 = vrsqrt.pop %v89
  %v96 = vmul.f32 %v89, %v95
  %vm97 = vcmp.eq.f32.partialorder %v89, inf
  %v98 = vsel %vm97, %v89, %v96
  %vm99 = vcmp.eq.f32.partialorder %v89, 0.0
  %v100 = vand.u32 %v89, 2147483648
  %v101 = vsel %vm99, %v100, %v98
  %v102 = vrsqrt.pop %v90
  %v103 = vmul.f32 %v90, %v102
  %vm104 = vcmp.eq.f32.partialorder %v90, inf
  %v105 = vsel %vm104, %v90, %v103
  %vm106 = vcmp.eq.f32.partialorder %v90, 0.0
  %v107 = vand.u32 %v90, 2147483648
  %v108 = vsel %vm106, %v107, %v105
  %v109 = vmul.f32 %v93, %v101
  %v110 = vmul.f32 %v94, %v108
  %v111 = vadd.f32 %v109, %v110
  %v112 = vld [vmem:[%s3] sm:$0xff]
  %v113 = vadd.f32 %v112, %v111
  %114 = vst [vmem:[%s3] sm:$0xff] %v113
  // Predicated region
  $region18: #{thresh_loss.1} parent=0 // pred_check
    _
  $region19: #{thresh_loss.1} parent=0 // pred_check_branch
    %116 = sbr.rel (0) target = $region21
  $region20: #{thresh_loss.1} parent=0 // pred_region
    _
  $region21: #{thresh_loss.1} parent=0 // pred_fallthru
    _
  // Predicated region
  $region22: #{thresh_loss.1} parent=0 // pred_check
    _
  $region23: #{thresh_loss.1} parent=0 // pred_check_branch
    %118 = sbr.rel (0) target = $region25
  $region24: #{thresh_loss.1} parent=0 // pred_region
    _
  $region25: #{thresh_loss.1} parent=0 // pred_fallthru
    _

</llo_original>
